<compile_context>
chip_gen: v7x
topology: tpu7x:2x2x1
jax: 0.10.0
libtpu: 0.0.40
codegen_flags: <defaults>
</compile_context>

<pallas_src>
import functools

import jax
import jax.numpy as jnp
import numpy as np
from jax import lax
from jax.experimental import pallas as pl
from jax.experimental.pallas import tpu as pltpu


def _gwc_kernel(bins_ref, left_ref, right_ref, *out_refs,
                d_tile, n_groups, build_lr, build_rl):
    F, Ht, W = left_ref.shape
    G = n_groups
    assert F % G == 0
    cpg = F // G
    inv_cpg = 1.0 / cpg

    idx = 0
    lr_ref = None
    rl_ref = None
    if build_lr:
        lr_ref = out_refs[idx]
        idx += 1
    if build_rl:
        rl_ref = out_refs[idx]
    out_dtype = (lr_ref if build_lr else rl_ref).dtype

    # First disparity bin handled by this grid step.
    d_base = pl.program_id(2) * d_tile

    # Fold the 1/cpg mean-scale into `left` once per grid step, in f32 so the
    # pre-scale costs no precision for bf16 inputs. The grouped view is a
    # leading-dim reshape only (lane/sublane layout untouched).
    left = left_ref[...].astype(jnp.float32) * inv_cpg
    left = left.reshape(G, cpg, Ht, W)
    right = right_ref[...]                      # native dtype; rolled as-is

    # Hoisted (1,1,W) lane iota; the compare / where broadcast over (G, Ht).
    lane = lax.broadcasted_iota(jnp.int32, (1, 1, W), 2)

    for j in range(d_tile):                     # static unroll over this d tile
        d = bins_ref[d_base + j]                # dynamic disparity from SMEM

        # shifted[..., w] = right[..., (w - d) % W]   (XLU dynamic lane rotate)
        shifted = pltpu.roll(right, shift=d, axis=2).reshape(G, cpg, Ht, W)

        # Per-group channel sum accumulated in f32 over cpg slices; the live
        # f32 temp is (G, Ht, W) instead of (F, Ht, W).
        acc = left[:, 0] * shifted[:, 0].astype(jnp.float32)
        for c in range(1, cpg):
            acc = acc + left[:, c] * shifted[:, c].astype(jnp.float32)

        # LR[w] = mean_c left[w] * right[w - d], zero for lanes w < d.
        lr = jnp.where(lane >= d, acc, 0.0).astype(out_dtype)
        if build_lr:
            lr_ref[:, j, :, :] = lr
        if build_rl:
            # RL[w] = LR[w + d]; LR's zero head wraps onto RL's zero tail, so
            # the roll needs no extra mask. Roll the already-cast tile.
            rl_ref[:, j, :, :] = pltpu.roll(lr, shift=(W - d) % W, axis=2)


def _vmem_capacity_bytes():
    try:
        return int(pltpu.get_tpu_info().vmem_capacity_bytes)
    except Exception:                       # defensive: fall back to v7x per-TC
        return 64 * 2 ** 20


def _divisors(n):
    return [d for d in range(1, n + 1) if n % d == 0]


def _pick_tiles(B, F, H, W, G, D, in_bytes, out_bytes, n_out, budget_bytes):
    """Choose (h_tile, d_tile): largest double-buffered block fitting the VMEM
    budget, with enough grid steps to feed two TensorCores (v7x)."""
    d_divs = _divisors(D)
    d_tile = max(d for d in d_divs if d <= 8)           # decouple VMEM from D
    h_cands = [h for h in range(8, H + 1, 8) if H % h == 0] or [H]

    def step_bytes(ht, dt):
        return 2 * F * ht * W * in_bytes + n_out * G * dt * ht * W * out_bytes

    def fits(ht, dt):
        return 2 * step_bytes(ht, dt) <= budget_bytes   # double-buffered

    while d_tile > 1 and not fits(min(h_cands), d_tile):
        d_tile = max(d for d in d_divs if d < d_tile)
    fitting = [h for h in h_cands if fits(h, d_tile)] or [min(h_cands)]
    h_tile = max(fitting)

    def n_steps(ht, dt):
        return B * (H // ht) * (D // dt)

    # Populate the parallel grid (>= 4 steps) so both v7x TCs stay busy.
    while n_steps(h_tile, d_tile) < 4 and d_tile > 1:
        d_tile = max(d for d in d_divs if d < d_tile)
    while n_steps(h_tile, d_tile) < 4 and h_tile > min(h_cands):
        h_tile = max(h for h in h_cands if h < h_tile)
    return h_tile, d_tile


def gwc_volume(features_left, features_right, bins, n_gwc_groups,
               build_lr=True, build_rl=True, out_dtype=None):
    """Pallas equivalent of GwcVolume.forward. Returns (gwc_vol_lr, gwc_vol_rl)."""
    if not (build_lr or build_rl):
        return None, None

    B, F, H, W = features_left.shape
    bins_arr = np.asarray(bins, np.int32).reshape(-1)
    D = int(bins_arr.shape[0])
    G = int(n_gwc_groups)
    assert F % G == 0
    assert np.all(bins_arr >= 0) and np.all(bins_arr < W), \
        "disparity bins must be non-negative and < W"

    out_dtype = jnp.dtype(features_left.dtype if out_dtype is None else out_dtype)
    in_bytes = jnp.dtype(features_left.dtype).itemsize
    out_bytes = out_dtype.itemsize
    n_out = int(build_lr) + int(build_rl)

    vmem_cap = _vmem_capacity_bytes()
    budget = int(0.45 * vmem_cap)      # ~57 MiB on 128 MiB parts, ~28 MiB on v7x
    h_tile, d_tile = _pick_tiles(B, F, H, W, G, D,
                                 in_bytes, out_bytes, n_out, budget)
    n_h, n_d = H // h_tile, D // d_tile

    kernel = functools.partial(_gwc_kernel, d_tile=d_tile, n_groups=G,
                               build_lr=build_lr, build_rl=build_rl)

    vol = jax.ShapeDtypeStruct((B, G, D, H, W), out_dtype)
    out_shape = tuple(vol for _ in range(n_out))
    # One (G, d_tile, h_tile, W) output block per grid step.
    out_spec = pl.BlockSpec((None, G, d_tile, h_tile, W),
                            lambda b, h, d, bins: (b, 0, d, h, 0))
    out_specs = tuple(out_spec for _ in range(n_out))
    # Inputs ignore the d axis -> feature blocks stay resident in VMEM across
    # consecutive d steps (no re-DMA).
    in_spec = pl.BlockSpec((None, F, h_tile, W),
                           lambda b, h, d, bins: (b, 0, h, 0))

    # Memory-bound custom call: tell XLA the real traffic.
    flops = 2 * B * D * F * H * W
    bytes_accessed = (2 * B * F * H * W * in_bytes
                      + n_out * B * G * D * H * W * out_bytes)
    cost = pl.CostEstimate(flops=flops, transcendentals=0,
                           bytes_accessed=bytes_accessed)

    step_bytes = (2 * F * h_tile * W * in_bytes
                  + n_out * G * d_tile * h_tile * W * out_bytes)
    # Double-buffered inputs+outputs + headroom, clamped below physical VMEM.
    vmem_limit = min(int(0.80 * vmem_cap),
                     max(16 * 2 ** 20, 2 * step_bytes + 4 * 2 ** 20))

    grid_spec = pltpu.PrefetchScalarGridSpec(
        num_scalar_prefetch=1,
        grid=(B, n_h, n_d),
        in_specs=[in_spec, in_spec],
        out_specs=out_specs,
    )

    outs = pl.pallas_call(
        kernel,
        out_shape=out_shape,
        grid_spec=grid_spec,
        compiler_params=pltpu.CompilerParams(
            dimension_semantics=("parallel", "parallel", "parallel"),
            vmem_limit_bytes=vmem_limit),
        cost_estimate=cost,
    )(jnp.asarray(bins_arr), features_left, features_right)

    lr = outs[0] if build_lr else None
    rl = outs[-1] if build_rl else None
    return lr, rl


def _reference_gwc_volume(fl, fr, bins, G):
    """Pure-numpy reference mirroring the PyTorch loop, for verification."""
    B, F, H, W = fl.shape
    cpg = F // G
    D = len(bins)
    lr = np.zeros((B, G, D, H, W), np.float32)
    rl = np.zeros((B, G, D, H, W), np.float32)
    fl = np.asarray(fl, np.float32)
    fr = np.asarray(fr, np.float32)

    def corr(a, b):
        Bc, Fc, Hc, Wc = a.shape
        return (a * b).reshape(Bc, G, cpg, Hc, Wc).mean(axis=2)

    for i, d in enumerate(bins):
        d = int(d)
        if d > 0:
            c = corr(fl[:, :, :, d:], fr[:, :, :, :-d])
            lr[:, :, i, :, d:] = c
            rl[:, :, i, :, :-d] = c
        else:
            c = corr(fl, fr)
            lr[:, :, i] = c
            rl[:, :, i] = c
    return lr, rl


if __name__ == "__main__":
    # Deterministic "module config": bins and group count (GwcVolume has no weights).
    bins = np.arange(8, dtype=np.int32)    # D = 8 disparity bins: 0..7
    n_gwc_groups = 4

    B, F, H, W = 2, 8, 16, 128             # W multiple of 128 -> lane-dense stores
    key = jax.random.PRNGKey(0)
    k_l, k_r = jax.random.split(key)
    features_left = jax.random.normal(k_l, (B, F, H, W), jnp.float32)
    features_right = jax.random.normal(k_r, (B, F, H, W), jnp.float32)

    lr, rl = gwc_volume(features_left, features_right, bins, n_gwc_groups,
                        build_lr=True, build_rl=True)
    lr = jax.block_until_ready(lr)
    rl = jax.block_until_ready(rl)

    ref_lr, ref_rl = _reference_gwc_volume(features_left, features_right,
                                           bins, n_gwc_groups)
    np.testing.assert_allclose(np.asarray(lr), ref_lr, rtol=1e-5, atol=1e-5)
    np.testing.assert_allclose(np.asarray(rl), ref_rl, rtol=1e-5, atol=1e-5)

    # Specialized single-direction call: RL is neither computed nor written.
    lr_only, rl_none = gwc_volume(features_left, features_right, bins,
                                  n_gwc_groups, build_lr=True, build_rl=False)
    lr_only = jax.block_until_ready(lr_only)
    assert rl_none is None
    np.testing.assert_allclose(np.asarray(lr_only), ref_lr, rtol=1e-5, atol=1e-5)

    print("KERNEL_OK")
</pallas_src>

<mosaic_0001>
module attributes {stable_mosaic.version = 11 : i64} {
  func.func @_gwc_kernel(%arg0: i32, %arg1: i32, %arg2: i32, %arg3: memref<8xi32, #tpu.memory_space<smem>>, %arg4: memref<1x8x16x128xf32, #tpu.memory_space<vmem>>, %arg5: memref<1x8x16x128xf32, #tpu.memory_space<vmem>>, %arg6: memref<1x4x4x16x128xf32, #tpu.memory_space<vmem>>, %arg7: memref<1x4x4x16x128xf32, #tpu.memory_space<vmem>>) attributes {dimension_semantics = [#tpu.dimension_semantics<parallel>, #tpu.dimension_semantics<parallel>, #tpu.dimension_semantics<parallel>], iteration_bounds = array<i64: 2, 1, 2>, scalar_prefetch = 1 : i64, scratch_operands = 0 : i64, tpu.core_type = #tpu.core_type<tc>, window_params = [{transform_indices = @transform_0, window_bounds = array<i64: 1, 8, 16, 128>}, {transform_indices = @transform_1, window_bounds = array<i64: 1, 8, 16, 128>}, {transform_indices = @transform_2, window_bounds = array<i64: 1, 4, 4, 16, 128>}, {transform_indices = @transform_3, window_bounds = array<i64: 1, 4, 4, 16, 128>}]} {
    %c4_i32 = arith.constant 4 : i32
    %0 = arith.muli %arg2, %c4_i32 : i32
    %c0 = arith.constant 0 : index
    %c0_0 = arith.constant 0 : index
    %c0_1 = arith.constant 0 : index
    %c0_2 = arith.constant 0 : index
    %1 = vector.load %arg4[%c0, %c0_0, %c0_1, %c0_2] : memref<1x8x16x128xf32, #tpu.memory_space<vmem>>, vector<1x8x16x128xf32>
    %2 = vector.shape_cast %1 : vector<1x8x16x128xf32> to vector<8x16x128xf32>
    %cst = arith.constant 5.000000e-01 : f32
    %3 = vector.broadcast %cst : f32 to vector<8x16x128xf32>
    %4 = arith.mulf %2, %3 : vector<8x16x128xf32>
    %5 = vector.shape_cast %4 : vector<8x16x128xf32> to vector<4x2x16x128xf32>
    %c0_3 = arith.constant 0 : index
    %c0_4 = arith.constant 0 : index
    %c0_5 = arith.constant 0 : index
    %c0_6 = arith.constant 0 : index
    %6 = vector.load %arg5[%c0_3, %c0_4, %c0_5, %c0_6] : memref<1x8x16x128xf32, #tpu.memory_space<vmem>>, vector<1x8x16x128xf32>
    %7 = vector.shape_cast %6 : vector<1x8x16x128xf32> to vector<8x16x128xf32>
    %8 = tpu.iota {dimensions = array<i32: 2>} : vector<1x1x128xi32>
    %c0_i32 = arith.constant 0 : i32
    %9 = arith.addi %0, %c0_i32 : i32
    %10 = arith.index_cast %9 : i32 to index
    %11 = memref.load %arg3[%10] : memref<8xi32, #tpu.memory_space<smem>>
    %12 = tpu.dynamic_rotate %7 by %11 dim 2 : vector<8x16x128xf32>, i32 -> vector<8x16x128xf32>
    %13 = vector.shape_cast %12 : vector<8x16x128xf32> to vector<4x2x16x128xf32>
    %14 = vector.extract_strided_slice %5 {offsets = [0, 0, 0, 0], sizes = [4, 1, 16, 128], strides = [1, 1, 1, 1]} : vector<4x2x16x128xf32> to vector<4x1x16x128xf32>
    %15 = vector.shape_cast %14 : vector<4x1x16x128xf32> to vector<4x16x128xf32>
    %16 = vector.extract_strided_slice %13 {offsets = [0, 0, 0, 0], sizes = [4, 1, 16, 128], strides = [1, 1, 1, 1]} : vector<4x2x16x128xf32> to vector<4x1x16x128xf32>
    %17 = vector.shape_cast %16 : vector<4x1x16x128xf32> to vector<4x16x128xf32>
    %18 = arith.mulf %15, %17 : vector<4x16x128xf32>
    %19 = vector.extract_strided_slice %5 {offsets = [0, 1, 0, 0], sizes = [4, 1, 16, 128], strides = [1, 1, 1, 1]} : vector<4x2x16x128xf32> to vector<4x1x16x128xf32>
    %20 = vector.shape_cast %19 : vector<4x1x16x128xf32> to vector<4x16x128xf32>
    %21 = vector.extract_strided_slice %13 {offsets = [0, 1, 0, 0], sizes = [4, 1, 16, 128], strides = [1, 1, 1, 1]} : vector<4x2x16x128xf32> to vector<4x1x16x128xf32>
    %22 = vector.shape_cast %21 : vector<4x1x16x128xf32> to vector<4x16x128xf32>
    %23 = arith.mulf %20, %22 : vector<4x16x128xf32>
    %24 = arith.addf %18, %23 : vector<4x16x128xf32>
    %25 = vector.broadcast %11 : i32 to vector<1x1x128xi32>
    %26 = arith.cmpi sge, %8, %25 : vector<1x1x128xi32>
    %cst_7 = arith.constant 0.000000e+00 : f32
    %27 = vector.shape_cast %26 : vector<1x1x128xi1> to vector<1x1x128xi1>
    %28 = vector.broadcast %27 : vector<1x1x128xi1> to vector<4x16x128xi1>
    %29 = vector.broadcast %cst_7 : f32 to vector<4x16x128xf32>
    %30 = arith.select %28, %24, %29 : vector<4x16x128xi1>, vector<4x16x128xf32>
    %c0_8 = arith.constant 0 : index
    %c0_9 = arith.constant 0 : index
    %c0_10 = arith.constant 0 : index
    %c0_11 = arith.constant 0 : index
    %c0_12 = arith.constant 0 : index
    %31 = vector.load %arg6[%c0_8, %c0_9, %c0_10, %c0_11, %c0_12] : memref<1x4x4x16x128xf32, #tpu.memory_space<vmem>>, vector<1x4x1x16x128xf32>
    %32 = vector.shape_cast %31 : vector<1x4x1x16x128xf32> to vector<4x16x128xf32>
    %33 = vector.shape_cast %30 : vector<4x16x128xf32> to vector<1x4x1x16x128xf32>
    tpu.vector_store %arg6[%c0_8, %c0_9, %c0_10, %c0_11, %c0_12], %33 {strides = array<i32>} : memref<1x4x4x16x128xf32, #tpu.memory_space<vmem>>, vector<1x4x1x16x128xf32>,
    %c128_i32 = arith.constant 128 : i32
    %34 = arith.subi %c128_i32, %11 : i32
    %c128_i32_13 = arith.constant 128 : i32
    %c0_i32_14 = arith.constant 0 : i32
    %35 = arith.cmpi eq, %c128_i32_13, %c0_i32_14 : i32
    %c1_i32 = arith.constant 1 : i32
    %36 = arith.select %35, %c1_i32, %c128_i32_13 : i32
    %37 = arith.remsi %34, %36 : i32
    %c0_i32_15 = arith.constant 0 : i32
    %38 = arith.cmpi ne, %37, %c0_i32_15 : i32
    %c0_i32_16 = arith.constant 0 : i32
    %39 = arith.cmpi slt, %37, %c0_i32_16 : i32
    %c0_i32_17 = arith.constant 0 : i32
    %40 = arith.cmpi slt, %36, %c0_i32_17 : i32
    %41 = arith.xori %39, %40 : i1
    %42 = arith.andi %41, %38 : i1
    %43 = arith.addi %37, %36 : i32
    %44 = arith.select %42, %43, %37 : i32
    %45 = tpu.dynamic_rotate %30 by %44 dim 2 : vector<4x16x128xf32>, i32 -> vector<4x16x128xf32>
    %c0_18 = arith.constant 0 : index
    %c0_19 = arith.constant 0 : index
    %c0_20 = arith.constant 0 : index
    %c0_21 = arith.constant 0 : index
    %c0_22 = arith.constant 0 : index
    %46 = vector.load %arg7[%c0_18, %c0_19, %c0_20, %c0_21, %c0_22] : memref<1x4x4x16x128xf32, #tpu.memory_space<vmem>>, vector<1x4x1x16x128xf32>
    %47 = vector.shape_cast %46 : vector<1x4x1x16x128xf32> to vector<4x16x128xf32>
    %48 = vector.shape_cast %45 : vector<4x16x128xf32> to vector<1x4x1x16x128xf32>
    tpu.vector_store %arg7[%c0_18, %c0_19, %c0_20, %c0_21, %c0_22], %48 {strides = array<i32>} : memref<1x4x4x16x128xf32, #tpu.memory_space<vmem>>, vector<1x4x1x16x128xf32>,
    %c1_i32_23 = arith.constant 1 : i32
    %49 = arith.addi %0, %c1_i32_23 : i32
    %50 = arith.index_cast %49 : i32 to index
    %51 = memref.load %arg3[%50] : memref<8xi32, #tpu.memory_space<smem>>
    %52 = tpu.dynamic_rotate %7 by %51 dim 2 : vector<8x16x128xf32>, i32 -> vector<8x16x128xf32>
    %53 = vector.shape_cast %52 : vector<8x16x128xf32> to vector<4x2x16x128xf32>
    %54 = vector.extract_strided_slice %5 {offsets = [0, 0, 0, 0], sizes = [4, 1, 16, 128], strides = [1, 1, 1, 1]} : vector<4x2x16x128xf32> to vector<4x1x16x128xf32>
    %55 = vector.shape_cast %54 : vector<4x1x16x128xf32> to vector<4x16x128xf32>
    %56 = vector.extract_strided_slice %53 {offsets = [0, 0, 0, 0], sizes = [4, 1, 16, 128], strides = [1, 1, 1, 1]} : vector<4x2x16x128xf32> to vector<4x1x16x128xf32>
    %57 = vector.shape_cast %56 : vector<4x1x16x128xf32> to vector<4x16x128xf32>
    %58 = arith.mulf %55, %57 : vector<4x16x128xf32>
    %59 = vector.extract_strided_slice %5 {offsets = [0, 1, 0, 0], sizes = [4, 1, 16, 128], strides = [1, 1, 1, 1]} : vector<4x2x16x128xf32> to vector<4x1x16x128xf32>
    %60 = vector.shape_cast %59 : vector<4x1x16x128xf32> to vector<4x16x128xf32>
    %61 = vector.extract_strided_slice %53 {offsets = [0, 1, 0, 0], sizes = [4, 1, 16, 128], strides = [1, 1, 1, 1]} : vector<4x2x16x128xf32> to vector<4x1x16x128xf32>
    %62 = vector.shape_cast %61 : vector<4x1x16x128xf32> to vector<4x16x128xf32>
    %63 = arith.mulf %60, %62 : vector<4x16x128xf32>
    %64 = arith.addf %58, %63 : vector<4x16x128xf32>
    %65 = vector.broadcast %51 : i32 to vector<1x1x128xi32>
    %66 = arith.cmpi sge, %8, %65 : vector<1x1x128xi32>
    %cst_24 = arith.constant 0.000000e+00 : f32
    %67 = vector.shape_cast %66 : vector<1x1x128xi1> to vector<1x1x128xi1>
    %68 = vector.broadcast %67 : vector<1x1x128xi1> to vector<4x16x128xi1>
    %69 = vector.broadcast %cst_24 : f32 to vector<4x16x128xf32>
    %70 = arith.select %68, %64, %69 : vector<4x16x128xi1>, vector<4x16x128xf32>
    %c0_25 = arith.constant 0 : index
    %c0_26 = arith.constant 0 : index
    %c1 = arith.constant 1 : index
    %c0_27 = arith.constant 0 : index
    %c0_28 = arith.constant 0 : index
    %71 = vector.load %arg6[%c0_25, %c0_26, %c1, %c0_27, %c0_28] : memref<1x4x4x16x128xf32, #tpu.memory_space<vmem>>, vector<1x4x1x16x128xf32>
    %72 = vector.shape_cast %71 : vector<1x4x1x16x128xf32> to vector<4x16x128xf32>
    %73 = vector.shape_cast %70 : vector<4x16x128xf32> to vector<1x4x1x16x128xf32>
    tpu.vector_store %arg6[%c0_25, %c0_26, %c1, %c0_27, %c0_28], %73 {strides = array<i32>} : memref<1x4x4x16x128xf32, #tpu.memory_space<vmem>>, vector<1x4x1x16x128xf32>,
    %c128_i32_29 = arith.constant 128 : i32
    %74 = arith.subi %c128_i32_29, %51 : i32
    %c128_i32_30 = arith.constant 128 : i32
    %c0_i32_31 = arith.constant 0 : i32
    %75 = arith.cmpi eq, %c128_i32_30, %c0_i32_31 : i32
    %c1_i32_32 = arith.constant 1 : i32
    %76 = arith.select %75, %c1_i32_32, %c128_i32_30 : i32
    %77 = arith.remsi %74, %76 : i32
    %c0_i32_33 = arith.constant 0 : i32
    %78 = arith.cmpi ne, %77, %c0_i32_33 : i32
    %c0_i32_34 = arith.constant 0 : i32
    %79 = arith.cmpi slt, %77, %c0_i32_34 : i32
    %c0_i32_35 = arith.constant 0 : i32
    %80 = arith.cmpi slt, %76, %c0_i32_35 : i32
    %81 = arith.xori %79, %80 : i1
    %82 = arith.andi %81, %78 : i1
    %83 = arith.addi %77, %76 : i32
    %84 = arith.select %82, %83, %77 : i32
    %85 = tpu.dynamic_rotate %70 by %84 dim 2 : vector<4x16x128xf32>, i32 -> vector<4x16x128xf32>
    %c0_36 = arith.constant 0 : index
    %c0_37 = arith.constant 0 : index
    %c1_38 = arith.constant 1 : index
    %c0_39 = arith.constant 0 : index
    %c0_40 = arith.constant 0 : index
    %86 = vector.load %arg7[%c0_36, %c0_37, %c1_38, %c0_39, %c0_40] : memref<1x4x4x16x128xf32, #tpu.memory_space<vmem>>, vector<1x4x1x16x128xf32>
    %87 = vector.shape_cast %86 : vector<1x4x1x16x128xf32> to vector<4x16x128xf32>
    %88 = vector.shape_cast %85 : vector<4x16x128xf32> to vector<1x4x1x16x128xf32>
    tpu.vector_store %arg7[%c0_36, %c0_37, %c1_38, %c0_39, %c0_40], %88 {strides = array<i32>} : memref<1x4x4x16x128xf32, #tpu.memory_space<vmem>>, vector<1x4x1x16x128xf32>,
    %c2_i32 = arith.constant 2 : i32
    %89 = arith.addi %0, %c2_i32 : i32
    %90 = arith.index_cast %89 : i32 to index
    %91 = memref.load %arg3[%90] : memref<8xi32, #tpu.memory_space<smem>>
    %92 = tpu.dynamic_rotate %7 by %91 dim 2 : vector<8x16x128xf32>, i32 -> vector<8x16x128xf32>
    %93 = vector.shape_cast %92 : vector<8x16x128xf32> to vector<4x2x16x128xf32>
    %94 = vector.extract_strided_slice %5 {offsets = [0, 0, 0, 0], sizes = [4, 1, 16, 128], strides = [1, 1, 1, 1]} : vector<4x2x16x128xf32> to vector<4x1x16x128xf32>
    %95 = vector.shape_cast %94 : vector<4x1x16x128xf32> to vector<4x16x128xf32>
    %96 = vector.extract_strided_slice %93 {offsets = [0, 0, 0, 0], sizes = [4, 1, 16, 128], strides = [1, 1, 1, 1]} : vector<4x2x16x128xf32> to vector<4x1x16x128xf32>
    %97 = vector.shape_cast %96 : vector<4x1x16x128xf32> to vector<4x16x128xf32>
    %98 = arith.mulf %95, %97 : vector<4x16x128xf32>
    %99 = vector.extract_strided_slice %5 {offsets = [0, 1, 0, 0], sizes = [4, 1, 16, 128], strides = [1, 1, 1, 1]} : vector<4x2x16x128xf32> to vector<4x1x16x128xf32>
    %100 = vector.shape_cast %99 : vector<4x1x16x128xf32> to vector<4x16x128xf32>
    %101 = vector.extract_strided_slice %93 {offsets = [0, 1, 0, 0], sizes = [4, 1, 16, 128], strides = [1, 1, 1, 1]} : vector<4x2x16x128xf32> to vector<4x1x16x128xf32>
    %102 = vector.shape_cast %101 : vector<4x1x16x128xf32> to vector<4x16x128xf32>
    %103 = arith.mulf %100, %102 : vector<4x16x128xf32>
    %104 = arith.addf %98, %103 : vector<4x16x128xf32>
    %105 = vector.broadcast %91 : i32 to vector<1x1x128xi32>
    %106 = arith.cmpi sge, %8, %105 : vector<1x1x128xi32>
    %cst_41 = arith.constant 0.000000e+00 : f32
    %107 = vector.shape_cast %106 : vector<1x1x128xi1> to vector<1x1x128xi1>
    %108 = vector.broadcast %107 : vector<1x1x128xi1> to vector<4x16x128xi1>
    %109 = vector.broadcast %cst_41 : f32 to vector<4x16x128xf32>
    %110 = arith.select %108, %104, %109 : vector<4x16x128xi1>, vector<4x16x128xf32>
    %c0_42 = arith.constant 0 : index
    %c0_43 = arith.constant 0 : index
    %c2 = arith.constant 2 : index
    %c0_44 = arith.constant 0 : index
    %c0_45 = arith.constant 0 : index
    %111 = vector.load %arg6[%c0_42, %c0_43, %c2, %c0_44, %c0_45] : memref<1x4x4x16x128xf32, #tpu.memory_space<vmem>>, vector<1x4x1x16x128xf32>
    %112 = vector.shape_cast %111 : vector<1x4x1x16x128xf32> to vector<4x16x128xf32>
    %113 = vector.shape_cast %110 : vector<4x16x128xf32> to vector<1x4x1x16x128xf32>
    tpu.vector_store %arg6[%c0_42, %c0_43, %c2, %c0_44, %c0_45], %113 {strides = array<i32>} : memref<1x4x4x16x128xf32, #tpu.memory_space<vmem>>, vector<1x4x1x16x128xf32>,
    %c128_i32_46 = arith.constant 128 : i32
    %114 = arith.subi %c128_i32_46, %91 : i32
    %c128_i32_47 = arith.constant 128 : i32
    %c0_i32_48 = arith.constant 0 : i32
    %115 = arith.cmpi eq, %c128_i32_47, %c0_i32_48 : i32
    %c1_i32_49 = arith.constant 1 : i32
    %116 = arith.select %115, %c1_i32_49, %c128_i32_47 : i32
    %117 = arith.remsi %114, %116 : i32
    %c0_i32_50 = arith.constant 0 : i32
    %118 = arith.cmpi ne, %117, %c0_i32_50 : i32
    %c0_i32_51 = arith.constant 0 : i32
    %119 = arith.cmpi slt, %117, %c0_i32_51 : i32
    %c0_i32_52 = arith.constant 0 : i32
    %120 = arith.cmpi slt, %116, %c0_i32_52 : i32
    %121 = arith.xori %119, %120 : i1
    %122 = arith.andi %121, %118 : i1
    %123 = arith.addi %117, %116 : i32
    %124 = arith.select %122, %123, %117 : i32
    %125 = tpu.dynamic_rotate %110 by %124 dim 2 : vector<4x16x128xf32>, i32 -> vector<4x16x128xf32>
    %c0_53 = arith.constant 0 : index
    %c0_54 = arith.constant 0 : index
    %c2_55 = arith.constant 2 : index
    %c0_56 = arith.constant 0 : index
    %c0_57 = arith.constant 0 : index
    %126 = vector.load %arg7[%c0_53, %c0_54, %c2_55, %c0_56, %c0_57] : memref<1x4x4x16x128xf32, #tpu.memory_space<vmem>>, vector<1x4x1x16x128xf32>
    %127 = vector.shape_cast %126 : vector<1x4x1x16x128xf32> to vector<4x16x128xf32>
    %128 = vector.shape_cast %125 : vector<4x16x128xf32> to vector<1x4x1x16x128xf32>
    tpu.vector_store %arg7[%c0_53, %c0_54, %c2_55, %c0_56, %c0_57], %128 {strides = array<i32>} : memref<1x4x4x16x128xf32, #tpu.memory_space<vmem>>, vector<1x4x1x16x128xf32>,
    %c3_i32 = arith.constant 3 : i32
    %129 = arith.addi %0, %c3_i32 : i32
    %130 = arith.index_cast %129 : i32 to index
    %131 = memref.load %arg3[%130] : memref<8xi32, #tpu.memory_space<smem>>
    %132 = tpu.dynamic_rotate %7 by %131 dim 2 : vector<8x16x128xf32>, i32 -> vector<8x16x128xf32>
    %133 = vector.shape_cast %132 : vector<8x16x128xf32> to vector<4x2x16x128xf32>
    %134 = vector.extract_strided_slice %5 {offsets = [0, 0, 0, 0], sizes = [4, 1, 16, 128], strides = [1, 1, 1, 1]} : vector<4x2x16x128xf32> to vector<4x1x16x128xf32>
    %135 = vector.shape_cast %134 : vector<4x1x16x128xf32> to vector<4x16x128xf32>
    %136 = vector.extract_strided_slice %133 {offsets = [0, 0, 0, 0], sizes = [4, 1, 16, 128], strides = [1, 1, 1, 1]} : vector<4x2x16x128xf32> to vector<4x1x16x128xf32>
    %137 = vector.shape_cast %136 : vector<4x1x16x128xf32> to vector<4x16x128xf32>
    %138 = arith.mulf %135, %137 : vector<4x16x128xf32>
    %139 = vector.extract_strided_slice %5 {offsets = [0, 1, 0, 0], sizes = [4, 1, 16, 128], strides = [1, 1, 1, 1]} : vector<4x2x16x128xf32> to vector<4x1x16x128xf32>
    %140 = vector.shape_cast %139 : vector<4x1x16x128xf32> to vector<4x16x128xf32>
    %141 = vector.extract_strided_slice %133 {offsets = [0, 1, 0, 0], sizes = [4, 1, 16, 128], strides = [1, 1, 1, 1]} : vector<4x2x16x128xf32> to vector<4x1x16x128xf32>
    %142 = vector.shape_cast %141 : vector<4x1x16x128xf32> to vector<4x16x128xf32>
    %143 = arith.mulf %140, %142 : vector<4x16x128xf32>
    %144 = arith.addf %138, %143 : vector<4x16x128xf32>
    %145 = vector.broadcast %131 : i32 to vector<1x1x128xi32>
    %146 = arith.cmpi sge, %8, %145 : vector<1x1x128xi32>
    %cst_58 = arith.constant 0.000000e+00 : f32
    %147 = vector.shape_cast %146 : vector<1x1x128xi1> to vector<1x1x128xi1>
    %148 = vector.broadcast %147 : vector<1x1x128xi1> to vector<4x16x128xi1>
    %149 = vector.broadcast %cst_58 : f32 to vector<4x16x128xf32>
    %150 = arith.select %148, %144, %149 : vector<4x16x128xi1>, vector<4x16x128xf32>
    %c0_59 = arith.constant 0 : index
    %c0_60 = arith.constant 0 : index
    %c3 = arith.constant 3 : index
    %c0_61 = arith.constant 0 : index
    %c0_62 = arith.constant 0 : index
    %151 = vector.load %arg6[%c0_59, %c0_60, %c3, %c0_61, %c0_62] : memref<1x4x4x16x128xf32, #tpu.memory_space<vmem>>, vector<1x4x1x16x128xf32>
    %152 = vector.shape_cast %151 : vector<1x4x1x16x128xf32> to vector<4x16x128xf32>
    %153 = vector.shape_cast %150 : vector<4x16x128xf32> to vector<1x4x1x16x128xf32>
    tpu.vector_store %arg6[%c0_59, %c0_60, %c3, %c0_61, %c0_62], %153 {strides = array<i32>} : memref<1x4x4x16x128xf32, #tpu.memory_space<vmem>>, vector<1x4x1x16x128xf32>,
    %c128_i32_63 = arith.constant 128 : i32
    %154 = arith.subi %c128_i32_63, %131 : i32
    %c128_i32_64 = arith.constant 128 : i32
    %c0_i32_65 = arith.constant 0 : i32
    %155 = arith.cmpi eq, %c128_i32_64, %c0_i32_65 : i32
    %c1_i32_66 = arith.constant 1 : i32
    %156 = arith.select %155, %c1_i32_66, %c128_i32_64 : i32
    %157 = arith.remsi %154, %156 : i32
    %c0_i32_67 = arith.constant 0 : i32
    %158 = arith.cmpi ne, %157, %c0_i32_67 : i32
    %c0_i32_68 = arith.constant 0 : i32
    %159 = arith.cmpi slt, %157, %c0_i32_68 : i32
    %c0_i32_69 = arith.constant 0 : i32
    %160 = arith.cmpi slt, %156, %c0_i32_69 : i32
    %161 = arith.xori %159, %160 : i1
    %162 = arith.andi %161, %158 : i1
    %163 = arith.addi %157, %156 : i32
    %164 = arith.select %162, %163, %157 : i32
    %165 = tpu.dynamic_rotate %150 by %164 dim 2 : vector<4x16x128xf32>, i32 -> vector<4x16x128xf32>
    %c0_70 = arith.constant 0 : index
    %c0_71 = arith.constant 0 : index
    %c3_72 = arith.constant 3 : index
    %c0_73 = arith.constant 0 : index
    %c0_74 = arith.constant 0 : index
    %166 = vector.load %arg7[%c0_70, %c0_71, %c3_72, %c0_73, %c0_74] : memref<1x4x4x16x128xf32, #tpu.memory_space<vmem>>, vector<1x4x1x16x128xf32>
    %167 = vector.shape_cast %166 : vector<1x4x1x16x128xf32> to vector<4x16x128xf32>
    %168 = vector.shape_cast %165 : vector<4x16x128xf32> to vector<1x4x1x16x128xf32>
    tpu.vector_store %arg7[%c0_70, %c0_71, %c3_72, %c0_73, %c0_74], %168 {strides = array<i32>} : memref<1x4x4x16x128xf32, #tpu.memory_space<vmem>>, vector<1x4x1x16x128xf32>,
    return
  }
  func.func @transform_0(%arg0: i32, %arg1: i32, %arg2: i32, %arg3: memref<8xi32, #tpu.memory_space<smem>>) -> (i32, i32, i32, i32) {
    %c0_i32 = arith.constant 0 : i32
    %c0_i32_0 = arith.constant 0 : i32
    %c0_i32_1 = arith.constant 0 : i32
    return %arg0, %c0_i32, %arg1, %c0_i32_0 : i32, i32, i32, i32
  }
  func.func @transform_1(%arg0: i32, %arg1: i32, %arg2: i32, %arg3: memref<8xi32, #tpu.memory_space<smem>>) -> (i32, i32, i32, i32) {
    %c0_i32 = arith.constant 0 : i32
    %c0_i32_0 = arith.constant 0 : i32
    %c0_i32_1 = arith.constant 0 : i32
    return %arg0, %c0_i32, %arg1, %c0_i32_0 : i32, i32, i32, i32
  }
  func.func @transform_2(%arg0: i32, %arg1: i32, %arg2: i32, %arg3: memref<8xi32, #tpu.memory_space<smem>>) -> (i32, i32, i32, i32, i32) {
    %c0_i32 = arith.constant 0 : i32
    %c0_i32_0 = arith.constant 0 : i32
    %c0_i32_1 = arith.constant 0 : i32
    return %arg0, %c0_i32, %arg2, %arg1, %c0_i32_0 : i32, i32, i32, i32, i32
  }
  func.func @transform_3(%arg0: i32, %arg1: i32, %arg2: i32, %arg3: memref<8xi32, #tpu.memory_space<smem>>) -> (i32, i32, i32, i32, i32) {
    %c0_i32 = arith.constant 0 : i32
    %c0_i32_0 = arith.constant 0 : i32
    %c0_i32_1 = arith.constant 0 : i32
    return %arg0, %c0_i32, %arg2, %arg1, %c0_i32_0 : i32, i32, i32, i32, i32
  }
}

</mosaic_0001>

<llo_original>
// kernel: tpu_custom_call.1
$region0: #{tpu_custom_call.1}
  #allocation0 [shape = 'u32[]', space=smem, size = 0x4, offset = 0x4, fixed_abs, tag = 'smem constant byte address 0x4 - core index']
  #allocation1 [shape = 'u32[144,128]{1,0:T(1,128)}', space=vmem, size = 0x12000, scoped, tag = 'internal scratch']
  #allocation2 [shape = 's32[1]{0}', space=sflag, size = 0x4, scoped, tag = 'scoped memory for tpu_custom_call.1']
  #allocation3 [shape = 'u8[512]{0}', space=smem, size = 0x200, scoped, tag = 'prefetched SMEM operand 0']
  #allocation12 [shape = 's32[]', space=sflag, size = 0x4, offset = 0, fixed_abs, tag = 'sflag constant byte address 0x0 - dummy sync flag']
  #allocation14 [shape = 's32[]', space=sflag, size = 0x4, offset = 0, fixed_abs, tag = 'sflag constant byte address 0x0 - dummy sync flag']
  %s0 = inlined_call_operand.hbm [shape: s32[8], index: 0, kind: input, shape index: {}]
  %s1 = inlined_call_operand.hbm [shape: f32[2,8,16,128], index: 1, kind: input, shape index: {}]
  %s2 = inlined_call_operand.hbm [shape: f32[2,8,16,128], index: 2, kind: input, shape index: {}]
  %s3 = inlined_call_operand.hbm [shape: f32[2,4,8,16,128], index: 3, kind: output, shape index: {0}]
  %s4 = inlined_call_operand.hbm [shape: f32[2,4,8,16,128], index: 4, kind: output, shape index: {1}]
  %5 = xla_tuple %s3, %s4
  %s6 = sld [smem:[#allocation0]]
  $region57: #{tpu_custom_call.1} parent=0
    _
  %s8 = ssub.s32 1, %s6
  %s9 = scalar_select 0, %s8, %s6
  %11 = dma.hbm_to_smem %s0, 16, [#allocation3], [#allocation2]
  %12 = dma.done [#allocation2], 16
  %13 = sfence
  $region1: #{tpu_custom_call.1} parent=0
    #allocation4 [shape = 'u8[131072]{0}', space=vmem, size = 0x20000, scoped, tag = 'input window, operand 1']
    #allocation5 [shape = 's32[2]{0}', space=sflag, size = 0x8, scoped, tag = 'scoped memory for tpu_custom_call.1']
    #allocation6 [shape = 's32[2]{0}', space=sflag, size = 0x8, scoped, tag = 'scoped memory for tpu_custom_call.1']
    #allocation7 [shape = 'u8[131072]{0}', space=vmem, size = 0x20000, scoped, tag = 'input window, operand 2']
    #allocation8 [shape = 's32[2]{0}', space=sflag, size = 0x8, scoped, tag = 'scoped memory for tpu_custom_call.1']
    #allocation9 [shape = 'u8[262144]{0}', space=vmem, size = 0x40000, scoped, tag = 'output window, operand 0']
    #allocation10 [shape = 'u8[262144]{0}', space=vmem, size = 0x40000, scoped, tag = 'output window, operand 1']
    #allocation11 [shape = 's32[2]{0}', space=sflag, size = 0x8, scoped, tag = 'scoped memory for tpu_custom_call.1']
    %14 = vsyncpa [#allocation5], 0
    %s15 = scalar_lea.sflag [#allocation5], 1
    %16 = vsyncpa %s15, 0
    %17 = vsyncpa [#allocation8], 0
    %s18 = scalar_lea.sflag [#allocation8], 1
    %19 = vsyncpa %s18, 0
    %20 = vsyncpa [#allocation6], 0
    %s21 = scalar_lea.sflag [#allocation6], 1
    %22 = vsyncpa %s21, 0
    %23 = vsyncpa [#allocation11], 0
    %s24 = scalar_lea.sflag [#allocation11], 1
    %25 = vsyncpa %s24, 0
    loop: start=0, step=1, limit=6
    $region2: #{tpu_custom_call.1} parent=1 // loop_pre_header
      _
    $region3: #{tpu_custom_call.1} parent=1 // loop_header
      %s27 = sphi 0, %s31
      %p28 = scmp.ge.s32.totalorder %s27, 6
      %s34 = sphi 0, %s53
      %s35 = sphi 0, %s49
      %s36 = sphi 0, %s45
      %s37 = sphi 0, %s34
      %s38 = sphi 0, %s35
      %s39 = sphi 0, %s36
      %s40 = sphi 0, %s37
      %s41 = sphi 0, %s38
      %s42 = sphi 0, %s39
      %s58 = sphi 0, %s60
      %s61 = sphi 0, %s58
      %s62 = sphi 0, %s61
      %s78 = sphi 0, %s62
      %s86 = sphi 0, %s88
      %s89 = sphi 0, %s86
      %s90 = sphi 0, %s89
      %s106 = sphi 0, %s90
      %s116 = sphi 0, %s118
      %s119 = sphi 0, %s116
      %s120 = sphi 0, %s119
      %s136 = sphi 0, %s120
      %s146 = sphi 0, %s148
      %s149 = sphi 0, %s146
      %s150 = sphi 0, %s149
      %s166 = sphi 0, %s150
    $region4: #{tpu_custom_call.1} parent=1 // loop_header_branch
      %30 = sbr.rel (%p28) target = $region8
    $region5: #{tpu_custom_call.1} parent=1 // loop_body
      %s32 = ssub.s32 %s27, 1
      %s33 = ssub.s32 %s27, 2
      %s43 = sadd.s32 1, %s36
      %p44 = scmp.ge.s32.totalorder %s43, 2
      %s45 = scalar_select %p44, 0, %s43
      %s46 = sadd.s32 1, %s35
      %s47 = scalar_select %p44, %s46, %s35
      %p48 = scmp.ge.s32.totalorder %s47, 1
      %s49 = scalar_select %p48, 0, %s47
      %s50 = sadd.s32 1, %s34
      %s51 = scalar_select %p48, %s50, %s34
      %p52 = scmp.ge.s32.totalorder %s51, 2
      %s53 = scalar_select %p52, 0, %s51
      %s54 = ssub.s32 %s34, %s53
      %s55 = ssub.s32 %s35, %s49
      %s56 = sor.u32 %s54, %s55
      %p57 = scmp.eq.s32.totalorder %s56, 0
      %s59 = sadd.s32 %s58, 1
      %s60 = scalar_select %p57, %s58, %s59
      %p63 = pneg %p57
      %p64 = scmp.eq.s32.totalorder %s27, 3
      %p65 = por %p63, %p64
      %p66 = scmp.ne.s32.totalorder %s58, %s61
      %p67 = scmp.eq.s32.totalorder %s27, 0
      %p68 = por %p66, %p67
      %p69 = scmp.ne.s32.totalorder %s58, %s61
      %p70 = scmp.eq.s32.totalorder %s32, 3
      %p71 = por %p69, %p70
      %p72 = scmp.ne.s32.totalorder %s61, %s62
      %p73 = scmp.eq.s32.totalorder %s32, 0
      %p74 = por %p72, %p73
      %p75 = scmp.ne.s32.totalorder %s61, %s62
      %p76 = scmp.eq.s32.totalorder %s33, 3
      %p77 = por %p75, %p76
      %p79 = scmp.ne.s32.totalorder %s62, %s78
      %p80 = scmp.eq.s32.totalorder %s33, 0
      %p81 = por %p79, %p80
      %s82 = ssub.s32 %s34, %s53
      %s83 = ssub.s32 %s35, %s49
      %s84 = sor.u32 %s82, %s83
      %p85 = scmp.eq.s32.totalorder %s84, 0
      %s87 = sadd.s32 %s86, 1
      %s88 = scalar_select %p85, %s86, %s87
      %p91 = pneg %p85
      %p92 = scmp.eq.s32.totalorder %s27, 3
      %p93 = por %p91, %p92
      %p94 = scmp.ne.s32.totalorder %s86, %s89
      %p95 = scmp.eq.s32.totalorder %s27, 0
      %p96 = por %p94, %p95
      %p97 = scmp.ne.s32.totalorder %s86, %s89
      %p98 = scmp.eq.s32.totalorder %s32, 3
      %p99 = por %p97, %p98
      %p100 = scmp.ne.s32.totalorder %s89, %s90
      %p101 = scmp.eq.s32.totalorder %s32, 0
      %p102 = por %p100, %p101
      %p103 = scmp.ne.s32.totalorder %s89, %s90
      %p104 = scmp.eq.s32.totalorder %s33, 3
      %p105 = por %p103, %p104
      %p107 = scmp.ne.s32.totalorder %s90, %s106
      %p108 = scmp.eq.s32.totalorder %s33, 0
      %p109 = por %p107, %p108
      %s110 = ssub.s32 %s34, %s53
      %s111 = ssub.s32 %s36, %s45
      %s112 = sor.u32 %s110, %s111
      %s113 = ssub.s32 %s35, %s49
      %s114 = sor.u32 %s112, %s113
      %p115 = scmp.eq.s32.totalorder %s114, 0
      %s117 = sadd.s32 %s116, 1
      %s118 = scalar_select %p115, %s116, %s117
      %p121 = pneg %p115
      %p122 = scmp.eq.s32.totalorder %s27, 3
      %p123 = por %p121, %p122
      %p124 = scmp.ne.s32.totalorder %s116, %s119
      %p125 = scmp.eq.s32.totalorder %s27, 0
      %p126 = por %p124, %p125
      %p127 = scmp.ne.s32.totalorder %s116, %s119
      %p128 = scmp.eq.s32.totalorder %s32, 3
      %p129 = por %p127, %p128
      %p130 = scmp.ne.s32.totalorder %s119, %s120
      %p131 = scmp.eq.s32.totalorder %s32, 0
      %p132 = por %p130, %p131
      %p133 = scmp.ne.s32.totalorder %s119, %s120
      %p134 = scmp.eq.s32.totalorder %s33, 3
      %p135 = por %p133, %p134
      %p137 = scmp.ne.s32.totalorder %s120, %s136
      %p138 = scmp.eq.s32.totalorder %s33, 0
      %p139 = por %p137, %p138
      %s140 = ssub.s32 %s34, %s53
      %s141 = ssub.s32 %s36, %s45
      %s142 = sor.u32 %s140, %s141
      %s143 = ssub.s32 %s35, %s49
      %s144 = sor.u32 %s142, %s143
      %p145 = scmp.eq.s32.totalorder %s144, 0
      %s147 = sadd.s32 %s146, 1
      %s148 = scalar_select %p145, %s146, %s147
      %p151 = pneg %p145
      %p152 = scmp.eq.s32.totalorder %s27, 3
      %p153 = por %p151, %p152
      %p154 = scmp.ne.s32.totalorder %s146, %s149
      %p155 = scmp.eq.s32.totalorder %s27, 0
      %p156 = por %p154, %p155
      %p157 = scmp.ne.s32.totalorder %s146, %s149
      %p158 = scmp.eq.s32.totalorder %s32, 3
      %p159 = por %p157, %p158
      %p160 = scmp.ne.s32.totalorder %s149, %s150
      %p161 = scmp.eq.s32.totalorder %s32, 0
      %p162 = por %p160, %p161
      %p163 = scmp.ne.s32.totalorder %s149, %s150
      %p164 = scmp.eq.s32.totalorder %s33, 3
      %p165 = por %p163, %p164
      %p167 = scmp.ne.s32.totalorder %s150, %s166
      %p168 = scmp.eq.s32.totalorder %s33, 0
      %p169 = por %p167, %p168
      %p170 = scmp.le.s32.totalorder 1, %s27
      %p171 = scmp.lt.s32.totalorder %s27, 5
      %p172 = pnand %p170, %p171
      %p173 = pneg %p172
      // Predicated region
      $region9: #{tpu_custom_call.1} parent=5 // pred_check
        _
      $region10: #{tpu_custom_call.1} parent=5 // pred_check_branch
        %175 = sbr.rel (%p172) target = $region12
      $region11: #{tpu_custom_call.1} parent=5 // pred_region
        %s176 = ssub.s32 %s27, 1
      $region12: #{tpu_custom_call.1} parent=5 // pred_fallthru
        _
      %p177 = scmp.lt.s32.totalorder %s27, 4
      // Predicated region
      $region13: #{tpu_custom_call.1} parent=5 // pred_check
        %p178 = pneg %p177
      $region14: #{tpu_custom_call.1} parent=5 // pred_check_branch
        %180 = sbr.rel (%p178) target = $region16
      $region15: #{tpu_custom_call.1} parent=5 // pred_region
        // Predicated region
        $region17: #{tpu_custom_call.1} parent=15 // pred_check
          %p181 = pneg %p68
        $region18: #{tpu_custom_call.1} parent=15 // pred_check_branch
          %183 = sbr.rel (%p181) target = $region20
        $region19: #{tpu_custom_call.1} parent=15 // pred_region
          %s184 = sand.u32 %s58, 1
          %s185 = scalar_lea.sflag [#allocation5], %s184
          %s186 = sand.u32 %s58, 1
          %s187 = smul.addr %s186, 128
          %s188 = scalar_lea.vmem [#allocation4], %s187
          %s189 = smul.u32 2, %s35
          %s191 = ssub.s32 2048, 2048
          %192 = vsyncadd %s185, %s191
          %s193 = smul.addr %s34, 16
          %s194 = sadd.s32 %s189, %s193
          %s195 = smul.addr %s194, 128
          %s196 = scalar_lea.hbm %s1, %s195
          %s197 = sshll.u32 %s188, 4
          %s198 = int_to_ptr.vmem [resolvable:$true] %s197
          %203 = dma.hbm_to_vmem [thread:$0]  %s196, 2048, %s198, %s185, 128, 128, 8
        $region20: #{tpu_custom_call.1} parent=15 // pred_fallthru
          _
        // Predicated region
        $region21: #{tpu_custom_call.1} parent=15 // pred_check
          %p204 = pneg %p96
        $region22: #{tpu_custom_call.1} parent=15 // pred_check_branch
          %206 = sbr.rel (%p204) target = $region24
        $region23: #{tpu_custom_call.1} parent=15 // pred_region
          %s207 = sand.u32 %s86, 1
          %s208 = scalar_lea.sflag [#allocation8], %s207
          %s209 = sand.u32 %s86, 1
          %s210 = smul.addr %s209, 128
          %s211 = scalar_lea.vmem [#allocation7], %s210
          %s212 = smul.u32 2, %s35
          %s214 = ssub.s32 2048, 2048
          %215 = vsyncadd %s208, %s214
          %s216 = smul.addr %s34, 16
          %s217 = sadd.s32 %s212, %s216
          %s218 = smul.addr %s217, 128
          %s219 = scalar_lea.hbm %s2, %s218
          %s220 = sshll.u32 %s211, 4
          %s221 = int_to_ptr.vmem [resolvable:$true] %s220
          %226 = dma.hbm_to_vmem [thread:$0]  %s219, 2048, %s221, %s208, 128, 128, 8
        $region24: #{tpu_custom_call.1} parent=15 // pred_fallthru
          _
      $region16: #{tpu_custom_call.1} parent=5 // pred_fallthru
        _
      %p227 = scmp.le.s32.totalorder 1, %s27
      %p228 = scmp.lt.s32.totalorder %s27, 5
      %p229 = pnand %p227, %p228
      %p230 = pneg %p229
      // Predicated region
      $region25: #{tpu_custom_call.1} parent=5 // pred_check
        _
      $region26: #{tpu_custom_call.1} parent=5 // pred_check_branch
        %232 = sbr.rel (%p229) target = $region28
      $region27: #{tpu_custom_call.1} parent=5 // pred_region
        %s233 = ssub.s32 %s27, 1
        %s234 = sand.u32 %s61, 1
        %s235 = scalar_lea.sflag [#allocation5], %s234
        %s236 = sand.u32 %s61, 1
        %s237 = smul.addr %s236, 128
        %s238 = scalar_lea.vmem [#allocation4], %s237
        // Predicated region
        $region29: #{tpu_custom_call.1} parent=27 // pred_check
          %p239 = pneg %p74
        $region30: #{tpu_custom_call.1} parent=27 // pred_check_branch
          %241 = sbr.rel (%p239) target = $region32
        $region31: #{tpu_custom_call.1} parent=27 // pred_region
          %242 = dma.done %s235, 2048
        $region32: #{tpu_custom_call.1} parent=27 // pred_fallthru
          _
        %s243 = sand.u32 %s89, 1
        %s244 = scalar_lea.sflag [#allocation8], %s243
        %s245 = sand.u32 %s89, 1
        %s246 = smul.addr %s245, 128
        %s247 = scalar_lea.vmem [#allocation7], %s246
        // Predicated region
        $region33: #{tpu_custom_call.1} parent=27 // pred_check
          %p248 = pneg %p102
        $region34: #{tpu_custom_call.1} parent=27 // pred_check_branch
          %250 = sbr.rel (%p248) target = $region36
        $region35: #{tpu_custom_call.1} parent=27 // pred_region
          %251 = dma.done %s244, 2048
        $region36: #{tpu_custom_call.1} parent=27 // pred_fallthru
          _
        %s252 = sand.u32 %s61, 1
        %s253 = scalar_lea.sflag [#allocation5], %s252
        %s254 = sand.u32 %s61, 1
        %s255 = smul.addr %s254, 128
        %s256 = scalar_lea.vmem [#allocation4], %s255
        %p257 = pneg %p74
        %p258 = pneg %p71
        %s259 = sand.u32 %s89, 1
        %s260 = scalar_lea.sflag [#allocation8], %s259
        %s261 = sand.u32 %s89, 1
        %s262 = smul.addr %s261, 128
        %s263 = scalar_lea.vmem [#allocation7], %s262
        %p264 = pneg %p102
        %p265 = pneg %p99
        %p266 = pneg %p132
        %p267 = pneg %p129
        %s268 = sand.u32 %s119, 1
        %s269 = scalar_lea.sflag [#allocation6], %s268
        %s270 = sand.u32 %s119, 1
        %s271 = smul.addr %s270, 256
        %s272 = scalar_lea.vmem [#allocation9], %s271
        %p273 = pneg %p162
        %p274 = pneg %p159
        %s275 = sand.u32 %s149, 1
        %s276 = scalar_lea.sflag [#allocation11], %s275
        %s277 = sand.u32 %s149, 1
        %s278 = smul.addr %s277, 256
        %s279 = scalar_lea.vmem [#allocation10], %s278
        %s280 = smul.u32 2, %s38
        %s281 = smul.u32 2, %s38
        %s282 = smul.u32 4, %s39
        %s283 = smul.u32 2, %s38
        %s284 = smul.u32 4, %s39
        %s285 = smul.u32 2, %s38
        %s286 = smul.u32 %s39, 4
        %v287 = vld [vmem:[%s238] sm:$0xff]
        %v288 = vld [vmem:[%s238 + $0x8] sm:$0xff]
        %v289 = vld [vmem:[%s238 + $0x10] sm:$0xff]
        %v290 = vld [vmem:[%s238 + $0x18] sm:$0xff]
        %v291 = vld [vmem:[%s238 + $0x20] sm:$0xff]
        %v292 = vld [vmem:[%s238 + $0x28] sm:$0xff]
        %v293 = vld [vmem:[%s238 + $0x30] sm:$0xff]
        %v294 = vld [vmem:[%s238 + $0x38] sm:$0xff]
        %v295 = vld [vmem:[%s238 + $0x40] sm:$0xff]
        %v296 = vld [vmem:[%s238 + $0x48] sm:$0xff]
        %v297 = vld [vmem:[%s238 + $0x50] sm:$0xff]
        %v298 = vld [vmem:[%s238 + $0x58] sm:$0xff]
        %v299 = vld [vmem:[%s238 + $0x60] sm:$0xff]
        %v300 = vld [vmem:[%s238 + $0x68] sm:$0xff]
        %v301 = vld [vmem:[%s238 + $0x70] sm:$0xff]
        %v302 = vld [vmem:[%s238 + $0x78] sm:$0xff]
        %v303 = vmul.f32 %v287, 0.5
        %v304 = vmul.f32 %v288, 0.5
        %v305 = vmul.f32 %v289, 0.5
        %v306 = vmul.f32 %v290, 0.5
        %v307 = vmul.f32 %v291, 0.5
        %v308 = vmul.f32 %v292, 0.5
        %v309 = vmul.f32 %v293, 0.5
        %v310 = vmul.f32 %v294, 0.5
        %v311 = vmul.f32 %v295, 0.5
        %v312 = vmul.f32 %v296, 0.5
        %v313 = vmul.f32 %v297, 0.5
        %v314 = vmul.f32 %v298, 0.5
        %v315 = vmul.f32 %v299, 0.5
        %v316 = vmul.f32 %v300, 0.5
        %v317 = vmul.f32 %v301, 0.5
        %v318 = vmul.f32 %v302, 0.5
        %v319 = vld [vmem:[%s247] sm:$0xff]
        %v320 = vld [vmem:[%s247 + $0x8] sm:$0xff]
        %v321 = vld [vmem:[%s247 + $0x10] sm:$0xff]
        %v322 = vld [vmem:[%s247 + $0x18] sm:$0xff]
        %v323 = vld [vmem:[%s247 + $0x20] sm:$0xff]
        %v324 = vld [vmem:[%s247 + $0x28] sm:$0xff]
        %v325 = vld [vmem:[%s247 + $0x30] sm:$0xff]
        %v326 = vld [vmem:[%s247 + $0x38] sm:$0xff]
        %v327 = vld [vmem:[%s247 + $0x40] sm:$0xff]
        %v328 = vld [vmem:[%s247 + $0x48] sm:$0xff]
        %v329 = vld [vmem:[%s247 + $0x50] sm:$0xff]
        %v330 = vld [vmem:[%s247 + $0x58] sm:$0xff]
        %v331 = vld [vmem:[%s247 + $0x60] sm:$0xff]
        %v332 = vld [vmem:[%s247 + $0x68] sm:$0xff]
        %v333 = vld [vmem:[%s247 + $0x70] sm:$0xff]
        %v334 = vld [vmem:[%s247 + $0x78] sm:$0xff]
        %v335 = vlaneseq
        %v336 = vand.u32 %v335, 127
        %s337 = sld [smem:[#allocation3 + %s286]]
        %s338 = sand.u32 %s337, 127
        %s339 = sand.u32 %s338, 127
        %340 = vrot.lane.b32.xlu0 %v319, %s339
        %v341 = vpop.permute.xlu0 %340
        %342 = vrot.lane.b32.xlu0 %v320, %s339
        %v343 = vpop.permute.xlu0 %342
        %344 = vrot.lane.b32.xlu0 %v321, %s339
        %v345 = vpop.permute.xlu0 %344
        %346 = vrot.lane.b32.xlu0 %v322, %s339
        %v347 = vpop.permute.xlu0 %346
        %348 = vrot.lane.b32.xlu0 %v323, %s339
        %v349 = vpop.permute.xlu0 %348
        %350 = vrot.lane.b32.xlu0 %v324, %s339
        %v351 = vpop.permute.xlu0 %350
        %352 = vrot.lane.b32.xlu0 %v325, %s339
        %v353 = vpop.permute.xlu0 %352
        %354 = vrot.lane.b32.xlu0 %v326, %s339
        %v355 = vpop.permute.xlu0 %354
        %356 = vrot.lane.b32.xlu0 %v327, %s339
        %v357 = vpop.permute.xlu0 %356
        %358 = vrot.lane.b32.xlu0 %v328, %s339
        %v359 = vpop.permute.xlu0 %358
        %360 = vrot.lane.b32.xlu0 %v329, %s339
        %v361 = vpop.permute.xlu0 %360
        %362 = vrot.lane.b32.xlu0 %v330, %s339
        %v363 = vpop.permute.xlu0 %362
        %364 = vrot.lane.b32.xlu0 %v331, %s339
        %v365 = vpop.permute.xlu0 %364
        %366 = vrot.lane.b32.xlu0 %v332, %s339
        %v367 = vpop.permute.xlu0 %366
        %368 = vrot.lane.b32.xlu0 %v333, %s339
        %v369 = vpop.permute.xlu0 %368
        %370 = vrot.lane.b32.xlu0 %v334, %s339
        %v371 = vpop.permute.xlu0 %370
        %v372 = vmul.f32 %v303, %v341
        %v373 = vmul.f32 %v304, %v343
        %v374 = vmul.f32 %v307, %v349
        %v375 = vmul.f32 %v308, %v351
        %v376 = vmul.f32 %v311, %v357
        %v377 = vmul.f32 %v312, %v359
        %v378 = vmul.f32 %v315, %v365
        %v379 = vmul.f32 %v316, %v367
        %v380 = vmul.f32 %v305, %v345
        %v381 = vmul.f32 %v306, %v347
        %v382 = vmul.f32 %v309, %v353
        %v383 = vmul.f32 %v310, %v355
        %v384 = vmul.f32 %v313, %v361
        %v385 = vmul.f32 %v314, %v363
        %v386 = vmul.f32 %v317, %v369
        %v387 = vmul.f32 %v318, %v371
        %v388 = vadd.f32 %v372, %v380
        %v389 = vadd.f32 %v373, %v381
        %v390 = vadd.f32 %v374, %v382
        %v391 = vadd.f32 %v375, %v383
        %v392 = vadd.f32 %v376, %v384
        %v393 = vadd.f32 %v377, %v385
        %v394 = vadd.f32 %v378, %v386
        %v395 = vadd.f32 %v379, %v387
        %v396 = vstv %s337
        %vm397 = vcmp.ge.s32.totalorder %v336, %v396
        %v398 = vsel %vm397, 1, 0
        %vm399 = vcmp.eq.s32.totalorder %v398, 1
        %v400 = vsel %vm399, %v388, 0.0
        %v401 = vsel %vm399, %v389, 0.0
        %v402 = vsel %vm399, %v390, 0.0
        %v403 = vsel %vm399, %v391, 0.0
        %v404 = vsel %vm399, %v392, 0.0
        %v405 = vsel %vm399, %v393, 0.0
        %v406 = vsel %vm399, %v394, 0.0
        %v407 = vsel %vm399, %v395, 0.0
        %408 = vst [vmem:[%s272] sm:$0xff] %v400
        %409 = vst [vmem:[%s272 + $0x8] sm:$0xff] %v401
        %410 = vst [vmem:[%s272 + $0x40] sm:$0xff] %v402
        %411 = vst [vmem:[%s272 + $0x48] sm:$0xff] %v403
        %412 = vst [vmem:[%s272 + $0x80] sm:$0xff] %v404
        %413 = vst [vmem:[%s272 + $0x88] sm:$0xff] %v405
        %414 = vst [vmem:[%s272 + $0xc0] sm:$0xff] %v406
        %415 = vst [vmem:[%s272 + $0xc8] sm:$0xff] %v407
        %s416 = ssub.s32 128, %s337
        %p417 = scmp.lt.s32.totalorder %s416, 0
        %s418 = ssub.s32 0, %s416
        %s419 = scalar_select %p417, %s418, %s416
        %s420 = sand.u32 %s419, 127
        %s421 = ssub.s32 0, %s420
        %s422 = scalar_select %p417, %s421, %s420
        %p423 = scmp.ne.s32.totalorder %s422, 0
        %p424 = scmp.lt.s32.totalorder %s422, 0
        %p425 = pnand %p424, %p423
        %p426 = pneg %p425
        %s427 = sadd.s32 %s422, 128
        %s428 = scalar_select %p426, %s427, %s422
        %s429 = sand.u32 %s428, 127
        %s430 = sand.u32 %s429, 127
        %431 = vrot.lane.b32.xlu0 %v400, %s430
        %v432 = vpop.permute.xlu0 %431
        %433 = vrot.lane.b32.xlu0 %v401, %s430
        %v434 = vpop.permute.xlu0 %433
        %435 = vrot.lane.b32.xlu0 %v402, %s430
        %v436 = vpop.permute.xlu0 %435
        %437 = vrot.lane.b32.xlu0 %v403, %s430
        %v438 = vpop.permute.xlu0 %437
        %439 = vrot.lane.b32.xlu0 %v404, %s430
        %v440 = vpop.permute.xlu0 %439
        %441 = vrot.lane.b32.xlu0 %v405, %s430
        %v442 = vpop.permute.xlu0 %441
        %443 = vrot.lane.b32.xlu0 %v406, %s430
        %v444 = vpop.permute.xlu0 %443
        %445 = vrot.lane.b32.xlu0 %v407, %s430
        %v446 = vpop.permute.xlu0 %445
        %447 = vst [vmem:[%s279] sm:$0xff] %v432
        %448 = vst [vmem:[%s279 + $0x8] sm:$0xff] %v434
        %449 = vst [vmem:[%s279 + $0x40] sm:$0xff] %v436
        %450 = vst [vmem:[%s279 + $0x48] sm:$0xff] %v438
        %451 = vst [vmem:[%s279 + $0x80] sm:$0xff] %v440
        %452 = vst [vmem:[%s279 + $0x88] sm:$0xff] %v442
        %453 = vst [vmem:[%s279 + $0xc0] sm:$0xff] %v444
        %454 = vst [vmem:[%s279 + $0xc8] sm:$0xff] %v446
        %s455 = sadd.s32 %s286, 1
        %s456 = sld [smem:[#allocation3 + %s455]]
        %s457 = sand.u32 %s456, 127
        %s458 = sand.u32 %s457, 127
        %459 = vrot.lane.b32.xlu0 %v319, %s458
        %v460 = vpop.permute.xlu0 %459
        %461 = vrot.lane.b32.xlu0 %v320, %s458
        %v462 = vpop.permute.xlu0 %461
        %463 = vrot.lane.b32.xlu0 %v321, %s458
        %v464 = vpop.permute.xlu0 %463
        %465 = vrot.lane.b32.xlu0 %v322, %s458
        %v466 = vpop.permute.xlu0 %465
        %467 = vrot.lane.b32.xlu0 %v323, %s458
        %v468 = vpop.permute.xlu0 %467
        %469 = vrot.lane.b32.xlu0 %v324, %s458
        %v470 = vpop.permute.xlu0 %469
        %471 = vrot.lane.b32.xlu0 %v325, %s458
        %v472 = vpop.permute.xlu0 %471
        %473 = vrot.lane.b32.xlu0 %v326, %s458
        %v474 = vpop.permute.xlu0 %473
        %475 = vrot.lane.b32.xlu0 %v327, %s458
        %v476 = vpop.permute.xlu0 %475
        %477 = vrot.lane.b32.xlu0 %v328, %s458
        %v478 = vpop.permute.xlu0 %477
        %479 = vrot.lane.b32.xlu0 %v329, %s458
        %v480 = vpop.permute.xlu0 %479
        %481 = vrot.lane.b32.xlu0 %v330, %s458
        %v482 = vpop.permute.xlu0 %481
        %483 = vrot.lane.b32.xlu0 %v331, %s458
        %v484 = vpop.permute.xlu0 %483
        %485 = vrot.lane.b32.xlu0 %v332, %s458
        %v486 = vpop.permute.xlu0 %485
        %487 = vrot.lane.b32.xlu0 %v333, %s458
        %v488 = vpop.permute.xlu0 %487
        %489 = vrot.lane.b32.xlu0 %v334, %s458
        %v490 = vpop.permute.xlu0 %489
        %v491 = vmul.f32 %v303, %v460
        %v492 = vmul.f32 %v304, %v462
        %v493 = vmul.f32 %v307, %v468
        %v494 = vmul.f32 %v308, %v470
        %v495 = vmul.f32 %v311, %v476
        %v496 = vmul.f32 %v312, %v478
        %v497 = vmul.f32 %v315, %v484
        %v498 = vmul.f32 %v316, %v486
        %v499 = vmul.f32 %v305, %v464
        %v500 = vmul.f32 %v306, %v466
        %v501 = vmul.f32 %v309, %v472
        %v502 = vmul.f32 %v310, %v474
        %v503 = vmul.f32 %v313, %v480
        %v504 = vmul.f32 %v314, %v482
        %v505 = vmul.f32 %v317, %v488
        %v506 = vmul.f32 %v318, %v490
        %v507 = vadd.f32 %v491, %v499
        %v508 = vadd.f32 %v492, %v500
        %v509 = vadd.f32 %v493, %v501
        %v510 = vadd.f32 %v494, %v502
        %v511 = vadd.f32 %v495, %v503
        %v512 = vadd.f32 %v496, %v504
        %v513 = vadd.f32 %v497, %v505
        %v514 = vadd.f32 %v498, %v506
        %v515 = vstv %s456
        %vm516 = vcmp.ge.s32.totalorder %v336, %v515
        %v517 = vsel %vm516, 1, 0
        %vm518 = vcmp.eq.s32.totalorder %v517, 1
        %v519 = vsel %vm518, %v507, 0.0
        %v520 = vsel %vm518, %v508, 0.0
        %v521 = vsel %vm518, %v509, 0.0
        %v522 = vsel %vm518, %v510, 0.0
        %v523 = vsel %vm518, %v511, 0.0
        %v524 = vsel %vm518, %v512, 0.0
        %v525 = vsel %vm518, %v513, 0.0
        %v526 = vsel %vm518, %v514, 0.0
        %s527 = scalar_lea.vmem %s272, 16 [#allocation9]
        %528 = vst [vmem:[%s527] sm:$0xff] %v519
        %529 = vst [vmem:[%s527 + $0x8] sm:$0xff] %v520
        %530 = vst [vmem:[%s527 + $0x40] sm:$0xff] %v521
        %531 = vst [vmem:[%s527 + $0x48] sm:$0xff] %v522
        %532 = vst [vmem:[%s527 + $0x80] sm:$0xff] %v523
        %533 = vst [vmem:[%s527 + $0x88] sm:$0xff] %v524
        %534 = vst [vmem:[%s527 + $0xc0] sm:$0xff] %v525
        %535 = vst [vmem:[%s527 + $0xc8] sm:$0xff] %v526
        %s536 = ssub.s32 128, %s456
        %p537 = scmp.lt.s32.totalorder %s536, 0
        %s538 = ssub.s32 0, %s536
        %s539 = scalar_select %p537, %s538, %s536
        %s540 = sand.u32 %s539, 127
        %s541 = ssub.s32 0, %s540
        %s542 = scalar_select %p537, %s541, %s540
        %p543 = scmp.ne.s32.totalorder %s542, 0
        %p544 = scmp.lt.s32.totalorder %s542, 0
        %p545 = pnand %p544, %p543
        %p546 = pneg %p545
        %s547 = sadd.s32 %s542, 128
        %s548 = scalar_select %p546, %s547, %s542
        %s549 = sand.u32 %s548, 127
        %s550 = sand.u32 %s549, 127
        %551 = vrot.lane.b32.xlu0 %v519, %s550
        %v552 = vpop.permute.xlu0 %551
        %553 = vrot.lane.b32.xlu0 %v520, %s550
        %v554 = vpop.permute.xlu0 %553
        %555 = vrot.lane.b32.xlu0 %v521, %s550
        %v556 = vpop.permute.xlu0 %555
        %557 = vrot.lane.b32.xlu0 %v522, %s550
        %v558 = vpop.permute.xlu0 %557
        %559 = vrot.lane.b32.xlu0 %v523, %s550
        %v560 = vpop.permute.xlu0 %559
        %561 = vrot.lane.b32.xlu0 %v524, %s550
        %v562 = vpop.permute.xlu0 %561
        %563 = vrot.lane.b32.xlu0 %v525, %s550
        %v564 = vpop.permute.xlu0 %563
        %565 = vrot.lane.b32.xlu0 %v526, %s550
        %v566 = vpop.permute.xlu0 %565
        %s567 = scalar_lea.vmem %s279, 16 [#allocation10]
        %568 = vst [vmem:[%s567] sm:$0xff] %v552
        %569 = vst [vmem:[%s567 + $0x8] sm:$0xff] %v554
        %570 = vst [vmem:[%s567 + $0x40] sm:$0xff] %v556
        %571 = vst [vmem:[%s567 + $0x48] sm:$0xff] %v558
        %572 = vst [vmem:[%s567 + $0x80] sm:$0xff] %v560
        %573 = vst [vmem:[%s567 + $0x88] sm:$0xff] %v562
        %574 = vst [vmem:[%s567 + $0xc0] sm:$0xff] %v564
        %575 = vst [vmem:[%s567 + $0xc8] sm:$0xff] %v566
        %s576 = sadd.s32 %s286, 2
        %s577 = sld [smem:[#allocation3 + %s576]]
        %s578 = sand.u32 %s577, 127
        %s579 = sand.u32 %s578, 127
        %580 = vrot.lane.b32.xlu0 %v319, %s579
        %v581 = vpop.permute.xlu0 %580
        %582 = vrot.lane.b32.xlu0 %v320, %s579
        %v583 = vpop.permute.xlu0 %582
        %584 = vrot.lane.b32.xlu0 %v321, %s579
        %v585 = vpop.permute.xlu0 %584
        %586 = vrot.lane.b32.xlu0 %v322, %s579
        %v587 = vpop.permute.xlu0 %586
        %588 = vrot.lane.b32.xlu0 %v323, %s579
        %v589 = vpop.permute.xlu0 %588
        %590 = vrot.lane.b32.xlu0 %v324, %s579
        %v591 = vpop.permute.xlu0 %590
        %592 = vrot.lane.b32.xlu0 %v325, %s579
        %v593 = vpop.permute.xlu0 %592
        %594 = vrot.lane.b32.xlu0 %v326, %s579
        %v595 = vpop.permute.xlu0 %594
        %596 = vrot.lane.b32.xlu0 %v327, %s579
        %v597 = vpop.permute.xlu0 %596
        %598 = vrot.lane.b32.xlu0 %v328, %s579
        %v599 = vpop.permute.xlu0 %598
        %600 = vrot.lane.b32.xlu0 %v329, %s579
        %v601 = vpop.permute.xlu0 %600
        %602 = vrot.lane.b32.xlu0 %v330, %s579
        %v603 = vpop.permute.xlu0 %602
        %604 = vrot.lane.b32.xlu0 %v331, %s579
        %v605 = vpop.permute.xlu0 %604
        %606 = vrot.lane.b32.xlu0 %v332, %s579
        %v607 = vpop.permute.xlu0 %606
        %608 = vrot.lane.b32.xlu0 %v333, %s579
        %v609 = vpop.permute.xlu0 %608
        %610 = vrot.lane.b32.xlu0 %v334, %s579
        %v611 = vpop.permute.xlu0 %610
        %v612 = vmul.f32 %v303, %v581
        %v613 = vmul.f32 %v304, %v583
        %v614 = vmul.f32 %v307, %v589
        %v615 = vmul.f32 %v308, %v591
        %v616 = vmul.f32 %v311, %v597
        %v617 = vmul.f32 %v312, %v599
        %v618 = vmul.f32 %v315, %v605
        %v619 = vmul.f32 %v316, %v607
        %v620 = vmul.f32 %v305, %v585
        %v621 = vmul.f32 %v306, %v587
        %v622 = vmul.f32 %v309, %v593
        %v623 = vmul.f32 %v310, %v595
        %v624 = vmul.f32 %v313, %v601
        %v625 = vmul.f32 %v314, %v603
        %v626 = vmul.f32 %v317, %v609
        %v627 = vmul.f32 %v318, %v611
        %v628 = vadd.f32 %v612, %v620
        %v629 = vadd.f32 %v613, %v621
        %v630 = vadd.f32 %v614, %v622
        %v631 = vadd.f32 %v615, %v623
        %v632 = vadd.f32 %v616, %v624
        %v633 = vadd.f32 %v617, %v625
        %v634 = vadd.f32 %v618, %v626
        %v635 = vadd.f32 %v619, %v627
        %v636 = vstv %s577
        %vm637 = vcmp.ge.s32.totalorder %v336, %v636
        %v638 = vsel %vm637, 1, 0
        %vm639 = vcmp.eq.s32.totalorder %v638, 1
        %v640 = vsel %vm639, %v628, 0.0
        %v641 = vsel %vm639, %v629, 0.0
        %v642 = vsel %vm639, %v630, 0.0
        %v643 = vsel %vm639, %v631, 0.0
        %v644 = vsel %vm639, %v632, 0.0
        %v645 = vsel %vm639, %v633, 0.0
        %v646 = vsel %vm639, %v634, 0.0
        %v647 = vsel %vm639, %v635, 0.0
        %s648 = scalar_lea.vmem %s272, 32 [#allocation9]
        %649 = vst [vmem:[%s648] sm:$0xff] %v640
        %650 = vst [vmem:[%s648 + $0x8] sm:$0xff] %v641
        %651 = vst [vmem:[%s648 + $0x40] sm:$0xff] %v642
        %652 = vst [vmem:[%s648 + $0x48] sm:$0xff] %v643
        %653 = vst [vmem:[%s648 + $0x80] sm:$0xff] %v644
        %654 = vst [vmem:[%s648 + $0x88] sm:$0xff] %v645
        %655 = vst [vmem:[%s648 + $0xc0] sm:$0xff] %v646
        %656 = vst [vmem:[%s648 + $0xc8] sm:$0xff] %v647
        %s657 = ssub.s32 128, %s577
        %p658 = scmp.lt.s32.totalorder %s657, 0
        %s659 = ssub.s32 0, %s657
        %s660 = scalar_select %p658, %s659, %s657
        %s661 = sand.u32 %s660, 127
        %s662 = ssub.s32 0, %s661
        %s663 = scalar_select %p658, %s662, %s661
        %p664 = scmp.ne.s32.totalorder %s663, 0
        %p665 = scmp.lt.s32.totalorder %s663, 0
        %p666 = pnand %p665, %p664
        %p667 = pneg %p666
        %s668 = sadd.s32 %s663, 128
        %s669 = scalar_select %p667, %s668, %s663
        %s670 = sand.u32 %s669, 127
        %s671 = sand.u32 %s670, 127
        %672 = vrot.lane.b32.xlu0 %v640, %s671
        %v673 = vpop.permute.xlu0 %672
        %674 = vrot.lane.b32.xlu0 %v641, %s671
        %v675 = vpop.permute.xlu0 %674
        %676 = vrot.lane.b32.xlu0 %v642, %s671
        %v677 = vpop.permute.xlu0 %676
        %678 = vrot.lane.b32.xlu0 %v643, %s671
        %v679 = vpop.permute.xlu0 %678
        %680 = vrot.lane.b32.xlu0 %v644, %s671
        %v681 = vpop.permute.xlu0 %680
        %682 = vrot.lane.b32.xlu0 %v645, %s671
        %v683 = vpop.permute.xlu0 %682
        %684 = vrot.lane.b32.xlu0 %v646, %s671
        %v685 = vpop.permute.xlu0 %684
        %686 = vrot.lane.b32.xlu0 %v647, %s671
        %v687 = vpop.permute.xlu0 %686
        %s688 = scalar_lea.vmem %s279, 32 [#allocation10]
        %689 = vst [vmem:[%s688] sm:$0xff] %v673
        %690 = vst [vmem:[%s688 + $0x8] sm:$0xff] %v675
        %691 = vst [vmem:[%s688 + $0x40] sm:$0xff] %v677
        %692 = vst [vmem:[%s688 + $0x48] sm:$0xff] %v679
        %693 = vst [vmem:[%s688 + $0x80] sm:$0xff] %v681
        %694 = vst [vmem:[%s688 + $0x88] sm:$0xff] %v683
        %695 = vst [vmem:[%s688 + $0xc0] sm:$0xff] %v685
        %696 = vst [vmem:[%s688 + $0xc8] sm:$0xff] %v687
        %s697 = sadd.s32 %s286, 3
        %s698 = sld [smem:[#allocation3 + %s697]]
        %s699 = sand.u32 %s698, 127
        %s700 = sand.u32 %s699, 127
        %701 = vrot.lane.b32.xlu0 %v319, %s700
        %v702 = vpop.permute.xlu0 %701
        %703 = vrot.lane.b32.xlu0 %v320, %s700
        %v704 = vpop.permute.xlu0 %703
        %705 = vrot.lane.b32.xlu0 %v321, %s700
        %v706 = vpop.permute.xlu0 %705
        %707 = vrot.lane.b32.xlu0 %v322, %s700
        %v708 = vpop.permute.xlu0 %707
        %709 = vrot.lane.b32.xlu0 %v323, %s700
        %v710 = vpop.permute.xlu0 %709
        %711 = vrot.lane.b32.xlu0 %v324, %s700
        %v712 = vpop.permute.xlu0 %711
        %713 = vrot.lane.b32.xlu0 %v325, %s700
        %v714 = vpop.permute.xlu0 %713
        %715 = vrot.lane.b32.xlu0 %v326, %s700
        %v716 = vpop.permute.xlu0 %715
        %717 = vrot.lane.b32.xlu0 %v327, %s700
        %v718 = vpop.permute.xlu0 %717
        %719 = vrot.lane.b32.xlu0 %v328, %s700
        %v720 = vpop.permute.xlu0 %719
        %721 = vrot.lane.b32.xlu0 %v329, %s700
        %v722 = vpop.permute.xlu0 %721
        %723 = vrot.lane.b32.xlu0 %v330, %s700
        %v724 = vpop.permute.xlu0 %723
        %725 = vrot.lane.b32.xlu0 %v331, %s700
        %v726 = vpop.permute.xlu0 %725
        %727 = vrot.lane.b32.xlu0 %v332, %s700
        %v728 = vpop.permute.xlu0 %727
        %729 = vrot.lane.b32.xlu0 %v333, %s700
        %v730 = vpop.permute.xlu0 %729
        %731 = vrot.lane.b32.xlu0 %v334, %s700
        %v732 = vpop.permute.xlu0 %731
        %v733 = vmul.f32 %v303, %v702
        %v734 = vmul.f32 %v304, %v704
        %v735 = vmul.f32 %v307, %v710
        %v736 = vmul.f32 %v308, %v712
        %v737 = vmul.f32 %v311, %v718
        %v738 = vmul.f32 %v312, %v720
        %v739 = vmul.f32 %v315, %v726
        %v740 = vmul.f32 %v316, %v728
        %v741 = vmul.f32 %v305, %v706
        %v742 = vmul.f32 %v306, %v708
        %v743 = vmul.f32 %v309, %v714
        %v744 = vmul.f32 %v310, %v716
        %v745 = vmul.f32 %v313, %v722
        %v746 = vmul.f32 %v314, %v724
        %v747 = vmul.f32 %v317, %v730
        %v748 = vmul.f32 %v318, %v732
        %v749 = vadd.f32 %v733, %v741
        %v750 = vadd.f32 %v734, %v742
        %v751 = vadd.f32 %v735, %v743
        %v752 = vadd.f32 %v736, %v744
        %v753 = vadd.f32 %v737, %v745
        %v754 = vadd.f32 %v738, %v746
        %v755 = vadd.f32 %v739, %v747
        %v756 = vadd.f32 %v740, %v748
        %v757 = vstv %s698
        %vm758 = vcmp.ge.s32.totalorder %v336, %v757
        %v759 = vsel %vm758, 1, 0
        %vm760 = vcmp.eq.s32.totalorder %v759, 1
        %v761 = vsel %vm760, %v749, 0.0
        %v762 = vsel %vm760, %v750, 0.0
        %v763 = vsel %vm760, %v751, 0.0
        %v764 = vsel %vm760, %v752, 0.0
        %v765 = vsel %vm760, %v753, 0.0
        %v766 = vsel %vm760, %v754, 0.0
        %v767 = vsel %vm760, %v755, 0.0
        %v768 = vsel %vm760, %v756, 0.0
        %s769 = scalar_lea.vmem %s272, 48 [#allocation9]
        %770 = vst [vmem:[%s769] sm:$0xff] %v761
        %771 = vst [vmem:[%s769 + $0x8] sm:$0xff] %v762
        %772 = vst [vmem:[%s769 + $0x40] sm:$0xff] %v763
        %773 = vst [vmem:[%s769 + $0x48] sm:$0xff] %v764
        %774 = vst [vmem:[%s769 + $0x80] sm:$0xff] %v765
        %775 = vst [vmem:[%s769 + $0x88] sm:$0xff] %v766
        %776 = vst [vmem:[%s769 + $0xc0] sm:$0xff] %v767
        %777 = vst [vmem:[%s769 + $0xc8] sm:$0xff] %v768
        %s778 = ssub.s32 128, %s698
        %p779 = scmp.lt.s32.totalorder %s778, 0
        %s780 = ssub.s32 0, %s778
        %s781 = scalar_select %p779, %s780, %s778
        %s782 = sand.u32 %s781, 127
        %s783 = ssub.s32 0, %s782
        %s784 = scalar_select %p779, %s783, %s782
        %p785 = scmp.ne.s32.totalorder %s784, 0
        %p786 = scmp.lt.s32.totalorder %s784, 0
        %p787 = pnand %p786, %p785
        %p788 = pneg %p787
        %s789 = sadd.s32 %s784, 128
        %s790 = scalar_select %p788, %s789, %s784
        %s791 = sand.u32 %s790, 127
        %s792 = sand.u32 %s791, 127
        %793 = vrot.lane.b32.xlu0 %v761, %s792
        %v794 = vpop.permute.xlu0 %793
        %795 = vrot.lane.b32.xlu0 %v762, %s792
        %v796 = vpop.permute.xlu0 %795
        %797 = vrot.lane.b32.xlu0 %v763, %s792
        %v798 = vpop.permute.xlu0 %797
        %799 = vrot.lane.b32.xlu0 %v764, %s792
        %v800 = vpop.permute.xlu0 %799
        %801 = vrot.lane.b32.xlu0 %v765, %s792
        %v802 = vpop.permute.xlu0 %801
        %803 = vrot.lane.b32.xlu0 %v766, %s792
        %v804 = vpop.permute.xlu0 %803
        %805 = vrot.lane.b32.xlu0 %v767, %s792
        %v806 = vpop.permute.xlu0 %805
        %807 = vrot.lane.b32.xlu0 %v768, %s792
        %v808 = vpop.permute.xlu0 %807
        %s809 = scalar_lea.vmem %s279, 48 [#allocation10]
        %810 = vst [vmem:[%s809] sm:$0xff] %v794
        %811 = vst [vmem:[%s809 + $0x8] sm:$0xff] %v796
        %812 = vst [vmem:[%s809 + $0x40] sm:$0xff] %v798
        %813 = vst [vmem:[%s809 + $0x48] sm:$0xff] %v800
        %814 = vst [vmem:[%s809 + $0x80] sm:$0xff] %v802
        %815 = vst [vmem:[%s809 + $0x88] sm:$0xff] %v804
        %816 = vst [vmem:[%s809 + $0xc0] sm:$0xff] %v806
        %817 = vst [vmem:[%s809 + $0xc8] sm:$0xff] %v808
        %s818 = sand.u32 %s119, 1
        %s819 = scalar_lea.sflag [#allocation6], %s818
        %s820 = sand.u32 %s119, 1
        %s821 = smul.addr %s820, 256
        %s822 = scalar_lea.vmem [#allocation9], %s821
        %s823 = sand.u32 %s149, 1
        %s824 = scalar_lea.sflag [#allocation11], %s823
        %s825 = sand.u32 %s149, 1
        %s826 = smul.addr %s825, 256
        %s827 = scalar_lea.vmem [#allocation10], %s826
        // Predicated region
        $region37: #{tpu_custom_call.1} parent=27 // pred_check
          %p828 = pneg %p129
        $region38: #{tpu_custom_call.1} parent=27 // pred_check_branch
          %830 = sbr.rel (%p828) target = $region40
        $region39: #{tpu_custom_call.1} parent=27 // pred_region
          #allocation13 [shape = 'u32[6]{0}', space=smem, size = 0x18, scoped, tag = 'DMA stride descriptor']
          %s831 = smul.u32 4, %s39
          %s832 = smul.u32 2, %s38
          %s834 = ssub.s32 4096, 4096
          %835 = vsyncadd %s819, %s834
          %s836 = smul.addr %s831, 2
          %s837 = sadd.s32 %s832, %s836
          %s838 = smul.addr %s37, 64
          %s839 = sadd.s32 %s837, %s838
          %s840 = smul.addr %s839, 128
          %s841 = scalar_lea.hbm %s3, %s840
          %s843 = sshll.u32 1, 14
          %s844 = sxor.u32 4294967295, %s843
          %s847 = sshll.u32 7, 18
          %s848 = sxor.u32 4294967295, %s847
          %s849 = sand.u32 0, %s848
          %s851 = sor.u32 %s849, 0
          %s853 = sshll.u32 3, 24
          %s854 = sxor.u32 4294967295, %s853
          %s855 = sand.u32 %s851, %s854
          %s857 = sor.u32 %s855, 0
          %s858 = sshll.u32 %s822, 4
          %s859 = int_to_ptr.vmem [resolvable:$true] %s858
          %865 = sst [smem:[#allocation13]] 1024
          %s866 = scalar_lea.smem [#allocation13], 1
          %867 = sst [smem:[%s866]] 2048
          %s868 = scalar_lea.smem [#allocation13], 2
          %869 = sst [smem:[%s868]] 8
          %s870 = scalar_lea.smem [#allocation13], 3
          %871 = sst [smem:[%s870]] 128
          %s872 = scalar_lea.smem [#allocation13], 4
          %873 = sst [smem:[%s872]] 128
          %s874 = scalar_lea.smem [#allocation13], 5
          %875 = sst [smem:[%s874]] 8
          %877 = dma.general %s859, 4096, %s841, %s819, [#allocation12], [#allocation13], %s857, 0
        $region40: #{tpu_custom_call.1} parent=27 // pred_fallthru
          _
        // Predicated region
        $region41: #{tpu_custom_call.1} parent=27 // pred_check
          %p878 = pneg %p159
        $region42: #{tpu_custom_call.1} parent=27 // pred_check_branch
          %880 = sbr.rel (%p878) target = $region44
        $region43: #{tpu_custom_call.1} parent=27 // pred_region
          #allocation15 [shape = 'u32[6]{0}', space=smem, size = 0x18, scoped, tag = 'DMA stride descriptor']
          %s881 = smul.u32 4, %s39
          %s882 = smul.u32 2, %s38
          %s884 = ssub.s32 4096, 4096
          %885 = vsyncadd %s824, %s884
          %s886 = smul.addr %s881, 2
          %s887 = sadd.s32 %s882, %s886
          %s888 = smul.addr %s37, 64
          %s889 = sadd.s32 %s887, %s888
          %s890 = smul.addr %s889, 128
          %s891 = scalar_lea.hbm %s4, %s890
          %s893 = sshll.u32 1, 14
          %s894 = sxor.u32 4294967295, %s893
          %s897 = sshll.u32 7, 18
          %s898 = sxor.u32 4294967295, %s897
          %s899 = sand.u32 0, %s898
          %s901 = sor.u32 %s899, 0
          %s903 = sshll.u32 3, 24
          %s904 = sxor.u32 4294967295, %s903
          %s905 = sand.u32 %s901, %s904
          %s907 = sor.u32 %s905, 0
          %s908 = sshll.u32 %s827, 4
          %s909 = int_to_ptr.vmem [resolvable:$true] %s908
          %915 = sst [smem:[#allocation15]] 1024
          %s916 = scalar_lea.smem [#allocation15], 1
          %917 = sst [smem:[%s916]] 2048
          %s918 = scalar_lea.smem [#allocation15], 2
          %919 = sst [smem:[%s918]] 8
          %s920 = scalar_lea.smem [#allocation15], 3
          %921 = sst [smem:[%s920]] 128
          %s922 = scalar_lea.smem [#allocation15], 4
          %923 = sst [smem:[%s922]] 128
          %s924 = scalar_lea.smem [#allocation15], 5
          %925 = sst [smem:[%s924]] 8
          %927 = dma.general %s909, 4096, %s891, %s824, [#allocation14], [#allocation15], %s907, 0
        $region44: #{tpu_custom_call.1} parent=27 // pred_fallthru
          _
      $region28: #{tpu_custom_call.1} parent=5 // pred_fallthru
        _
      %p928 = scmp.le.s32.totalorder 2, %s27
      // Predicated region
      $region45: #{tpu_custom_call.1} parent=5 // pred_check
        %p929 = pneg %p928
      $region46: #{tpu_custom_call.1} parent=5 // pred_check_branch
        %931 = sbr.rel (%p929) target = $region48
      $region47: #{tpu_custom_call.1} parent=5 // pred_region
        %s932 = ssub.s32 %s27, 2
        // Predicated region
        $region49: #{tpu_custom_call.1} parent=47 // pred_check
          %p933 = pneg %p135
        $region50: #{tpu_custom_call.1} parent=47 // pred_check_branch
          %935 = sbr.rel (%p933) target = $region52
        $region51: #{tpu_custom_call.1} parent=47 // pred_region
          %s936 = sand.u32 %s120, 1
          %s937 = scalar_lea.sflag [#allocation6], %s936
          %s938 = sand.u32 %s120, 1
          %s939 = smul.addr %s938, 256
          %s940 = scalar_lea.vmem [#allocation9], %s939
          %941 = dma.done %s937, 4096
        $region52: #{tpu_custom_call.1} parent=47 // pred_fallthru
          _
        // Predicated region
        $region53: #{tpu_custom_call.1} parent=47 // pred_check
          %p942 = pneg %p165
        $region54: #{tpu_custom_call.1} parent=47 // pred_check_branch
          %944 = sbr.rel (%p942) target = $region56
        $region55: #{tpu_custom_call.1} parent=47 // pred_region
          %s945 = sand.u32 %s150, 1
          %s946 = scalar_lea.sflag [#allocation11], %s945
          %s947 = sand.u32 %s150, 1
          %s948 = smul.addr %s947, 256
          %s949 = scalar_lea.vmem [#allocation10], %s948
          %950 = dma.done %s946, 4096
        $region56: #{tpu_custom_call.1} parent=47 // pred_fallthru
          _
      $region48: #{tpu_custom_call.1} parent=5 // pred_fallthru
        _
    $region6: #{tpu_custom_call.1} parent=1 // loop_footer
      %s31 = sadd.s32 1, %s27
    $region7: #{tpu_custom_call.1} parent=1 // loop_footer_branch
      %26 = sbr.rel target = $region3
    $region8: #{tpu_custom_call.1} parent=1 // loop_exit
      _
    %951 = vsyncpa [#allocation5], 1
    %s952 = scalar_lea.sflag [#allocation5], 1
    %953 = vsyncpa %s952, 1
    %954 = vsyncpa [#allocation8], 1
    %s955 = scalar_lea.sflag [#allocation8], 1
    %956 = vsyncpa %s955, 1
    %957 = vsyncpa [#allocation6], 1
    %s958 = scalar_lea.sflag [#allocation6], 1
    %959 = vsyncpa %s958, 1
    %960 = vsyncpa [#allocation11], 1
    %s961 = scalar_lea.sflag [#allocation11], 1
    %962 = vsyncpa %s961, 1

</llo_original>
